<compile_context>
chip_gen: v7x
topology: tpu7x:2x2x1
jax: 0.10.0
libtpu: 0.0.40
codegen_flags: <defaults>
</compile_context>

<pallas_src>
import functools

import numpy as np
import jax
import jax.numpy as jnp
from jax import lax
from jax.experimental import pallas as pl
from jax.experimental.pallas import tpu as pltpu


def _graph_network_kernel(avec, num_relations, n_nodes, offsets,
                          x_ref, a1_ref, arel_ref, invdeg_ref, seg_ref,
                          w1_ref, b1_ref,
                          wrel_ref, w2r_ref, b2_ref,
                          wlin_ref, blin_ref,
                          wfc_ref, bfc_ref,
                          out_ref):
    f32 = jnp.float32
    bf16 = jnp.bfloat16
    R, N = num_relations, n_nodes
    H = w2r_ref.shape[0]

    x = x_ref[...]                                   # [N, F] f32 (elementwise path)
    x_bf = x.astype(bf16)                            # MXU operand

    # ---- conv1: GraphConv, single fused K=2F matmul ----
    agg1 = jnp.dot(a1_ref[...], x_bf, preferred_element_type=f32)          # [N, F]
    xa = jnp.concatenate([x_bf, agg1.astype(bf16)], axis=-1)               # [N, 2F]
    h1 = jnp.dot(xa, w1_ref[...], preferred_element_type=f32) + b1_ref[...]  # [N, H]
    h1_bf = h1.astype(bf16)

    # ---- conv2: RGCNConv ----
    # one (R*N, N) @ (N, H) neighbor matmul, then a layout-free sublane reshape
    # and a batched per-relation weight application (no lane concat / relayout).
    msg_all = jnp.dot(arel_ref[...], h1_bf, preferred_element_type=f32)    # [R*N, H]
    msg3 = msg_all.reshape(R, N, H).astype(bf16)                           # [R, N, H]
    per_rel = lax.dot_general(
        msg3, wrel_ref[...],
        dimension_numbers=(((2,), (1,)), ((0,), (0,))),
        preferred_element_type=f32)                                        # [R, N, H]
    acc = jnp.sum(per_rel, axis=0)                                         # [N, H] f32
    # NOTE: old PyG RGCNConv (DialogueGCN era) uses aggr='mean' over ALL incoming
    # edges, i.e. division by total in-degree (not per-relation degree).
    h2 = (acc * invdeg_ref[...]
          + jnp.dot(h1_bf, w2r_ref[...], preferred_element_type=f32)
          + b2_ref[...])                                                   # [N, H] f32
    h2_bf = h2.astype(bf16)

    # ---- per-graph pooling ----
    # sum-pool: single seg @ [x | h2] matmul (output lanes F+H).
    xh_bf = jnp.concatenate([x_bf, h2_bf], axis=-1)                        # [N, F+H]
    sums = jnp.dot(seg_ref[...], xh_bf, preferred_element_type=f32)        # [G, F+H]
    # max-pool: unrolled static-slice reductions (seq_lengths are static) --
    # no seg3 input and no [G, N, F+H] broadcast materialization.
    xh = jnp.concatenate([x, h2], axis=-1)                                 # [N, F+H] f32
    maxs = jnp.concatenate(
        [jnp.max(xh[int(offsets[g]):int(offsets[g + 1]), :], axis=0, keepdims=True)
         for g in range(len(offsets) - 1)], axis=0)                        # [G, F+H]

    # ---- head: single Linear over [sums | maxs] -> ReLU -> Dropout(id) -> Linear ----
    pooled = jnp.concatenate([sums, maxs], axis=-1).astype(bf16)           # [G, 2(F+H)]
    hid = jnp.dot(pooled, wlin_ref[...], preferred_element_type=f32) + blin_ref[...]
    hid = jnp.maximum(hid, 0.0)
    # TODO(synk): nn.Dropout(0.5) treated as identity (eval / inference mode).
    logits = jnp.dot(hid.astype(bf16), wfc_ref[...],
                     preferred_element_type=f32) + bfc_ref[...]            # [G, C]

    if avec:
        out_ref[...] = logits
    else:
        m = jnp.max(logits, axis=-1, keepdims=True)
        z = logits - m
        lse = jnp.log(jnp.sum(jnp.exp(z), axis=-1, keepdims=True))
        out_ref[...] = z - lse


def init_params(key, num_features, hidden_size, graph_class_num, num_relations,
                num_bases=30):
    ks = jax.random.split(key, 12)
    s = 0.1
    p = {
        "w1_root": s * jax.random.normal(ks[0], (num_features, hidden_size), jnp.float32),
        "w1_nbr":  s * jax.random.normal(ks[1], (num_features, hidden_size), jnp.float32),
        "b1":      s * jax.random.normal(ks[2], (hidden_size,), jnp.float32),
        "basis":   s * jax.random.normal(ks[3], (num_bases, hidden_size, hidden_size), jnp.float32),
        "comp":    s * jax.random.normal(ks[4], (num_relations, num_bases), jnp.float32),
        "w2_root": s * jax.random.normal(ks[5], (hidden_size, hidden_size), jnp.float32),
        "b2":      s * jax.random.normal(ks[6], (hidden_size,), jnp.float32),
        "w_lin":   s * jax.random.normal(ks[7], (2 * (num_features + hidden_size), hidden_size), jnp.float32),
        "b_lin":   s * jax.random.normal(ks[8], (hidden_size,), jnp.float32),
        "w_fc":    s * jax.random.normal(ks[9], (hidden_size, graph_class_num), jnp.float32),
        "b_fc":    s * jax.random.normal(ks[10], (graph_class_num,), jnp.float32),
        "num_relations": num_relations,
    }
    return p


def prepare_weights(params):
    """One-time per-model weight prep (hoisted out of the per-call forward):
    basis einsum, bf16 casts, and the fused/stacked weight layouts."""
    bf16 = jnp.bfloat16
    F, H = params["w1_root"].shape
    C = params["w_fc"].shape[1]
    # basis-combined per-relation weights W_r = sum_b comp[r,b] * basis[b]
    w_rel = jnp.einsum("rb,bij->rij", params["comp"], params["basis"])     # [R, H, H]
    prep = {
        # conv1 fused weight: rows 0:F multiply x, rows F:2F multiply agg1
        "w1":    jnp.concatenate([params["w1_root"], params["w1_nbr"]], axis=0).astype(bf16),
        "b1":    params["b1"].reshape(1, H).astype(jnp.float32),
        "wrel":  w_rel.astype(bf16),                                       # [R, H, H]
        "w2r":   params["w2_root"].astype(bf16),
        "b2":    params["b2"].reshape(1, H).astype(jnp.float32),
        "w_lin": params["w_lin"].astype(bf16),                             # unsplit [2(F+H), H]
        "b_lin": params["b_lin"].reshape(1, H).astype(jnp.float32),
        "w_fc":  params["w_fc"].astype(bf16),
        "b_fc":  params["b_fc"].reshape(1, C).astype(jnp.float32),
    }
    return prep


def graph_network_forward(prep, x, edge_index, edge_norm, edge_type,
                          seq_lengths, avec=False):
    N0, F = x.shape
    H = prep["w1"].shape[1]
    C = prep["w_fc"].shape[1]
    R = prep["wrel"].shape[0]
    bf16 = jnp.bfloat16

    seq_lengths = tuple(int(s) for s in seq_lengths)
    assert all(s > 0 for s in seq_lengths), "empty graph segments are not supported"
    assert sum(seq_lengths) == N0

    # Pad node axis to a multiple of 16 (bf16 sublane packing). Padded rows are
    # excluded from aggregation and pooling because adjacency / seg stay zero.
    N = int(-(-N0 // 16) * 16)
    if N != N0:
        x = jnp.concatenate([x, jnp.zeros((N - N0, F), x.dtype)], axis=0)

    src = edge_index[0]
    dst = edge_index[1]

    # --- dense message-passing operators (glue) ---
    # TODO(synk): for realistic N, replace dense O(R*N^2) adjacency with a sparse
    # CSR scalar-prefetch path and a "parallel" node-row grid (2 TCs on v7x).
    a1 = jnp.zeros((N, N), jnp.float32).at[dst, src].add(edge_norm)
    a_rel = jnp.zeros((R, N, N), jnp.float32).at[edge_type, dst, src].add(1.0)
    deg = jnp.zeros((N,), jnp.float32).at[dst].add(1.0)
    inv_deg = jnp.where(deg > 0, 1.0 / deg, 0.0).reshape(N, 1)
    a_rel_flat = a_rel.reshape(R * N, N)                    # rows r*N:(r+1)*N = A_r

    # --- segment indicator for sum-pooling (static seq_lengths) ---
    G = len(seq_lengths)
    offsets = np.concatenate([[0], np.cumsum(seq_lengths)]).astype(np.int64)
    seg_np = np.zeros((G, N), np.float32)
    for g in range(G):
        seg_np[g, offsets[g]:offsets[g + 1]] = 1.0
    seg = jnp.asarray(seg_np, dtype=bf16)

    inputs = (x,
              a1.astype(bf16), a_rel_flat.astype(bf16), inv_deg, seg,
              prep["w1"], prep["b1"],
              prep["wrel"], prep["w2r"], prep["b2"],
              prep["w_lin"], prep["b_lin"],
              prep["w_fc"], prep["b_fc"])

    kernel = functools.partial(_graph_network_kernel, bool(avec), R, N,
                               tuple(int(o) for o in offsets))

    # VMEM budget from actual footprint + headroom; capped well under v7x's
    # 64 MiB physical VMEM (v5e/v6e have 128 MiB).
    footprint = sum(int(np.prod(a.shape)) * a.dtype.itemsize for a in inputs) + G * C * 4
    vmem_limit = int(min(max(8 * footprint, 4 << 20), 48 << 20))

    out = pl.pallas_call(
        kernel,
        out_shape=jax.ShapeDtypeStruct((G, C), jnp.float32),
        in_specs=[pl.BlockSpec(memory_space=pltpu.MemorySpace.VMEM)] * len(inputs),
        out_specs=pl.BlockSpec(memory_space=pltpu.MemorySpace.VMEM),
        compiler_params=pltpu.CompilerParams(vmem_limit_bytes=vmem_limit),
    )(*inputs)
    return out


if __name__ == "__main__":
    key = jax.random.PRNGKey(0)

    # small shapes implied by the forward pass
    num_features = 16
    hidden_size = 32
    graph_class_num = 8
    num_relations = 4
    seq_lengths = (8, 8, 8)          # 3 graphs, 24 nodes total
    N = sum(seq_lengths)
    edges_per_graph = 20

    k_param, k_x, k_e = jax.random.split(key, 3)
    params = init_params(k_param, num_features, hidden_size, graph_class_num,
                         num_relations, num_bases=30)
    prep = prepare_weights(params)   # hoisted one-time weight prep

    x = jax.random.normal(k_x, (N, num_features), jnp.float32)

    # deterministic random edges, each edge stays within its graph segment
    src_list, dst_list = [], []
    offsets = np.concatenate([[0], np.cumsum(seq_lengths)])
    ek = jax.random.split(k_e, 2 * len(seq_lengths) + 2)
    for g in range(len(seq_lengths)):
        lo, hi = int(offsets[g]), int(offsets[g + 1])
        src_list.append(jax.random.randint(ek[2 * g], (edges_per_graph,), lo, hi))
        dst_list.append(jax.random.randint(ek[2 * g + 1], (edges_per_graph,), lo, hi))
    src = jnp.concatenate(src_list)
    dst = jnp.concatenate(dst_list)
    edge_index = jnp.stack([src, dst], axis=0)                              # [2, E]
    E = edge_index.shape[1]
    edge_norm = jax.random.uniform(ek[-2], (E,), jnp.float32, 0.1, 1.0)
    edge_type = jax.random.randint(ek[-1], (E,), 0, num_relations)

    forward = jax.jit(graph_network_forward, static_argnames=("seq_lengths", "avec"))
    out = forward(prep, x, edge_index, edge_norm, edge_type, seq_lengths, avec=False)
    out = jax.block_until_ready(out)

    assert out.shape == (len(seq_lengths), graph_class_num)
    assert bool(jnp.all(jnp.isfinite(out)))
    # rows of log_softmax should (approximately) exponentiate-sum to 1
    assert bool(jnp.allclose(jnp.sum(jnp.exp(out), axis=-1), 1.0, atol=1e-4))
    print("KERNEL_OK")
</pallas_src>

<mosaic_0001>
module attributes {stable_mosaic.version = 11 : i64} {
  func.func @_graph_network_kernel(%arg0: memref<32x16xf32, #tpu.memory_space<vmem>>, %arg1: memref<32x32xbf16, #tpu.memory_space<vmem>>, %arg2: memref<128x32xbf16, #tpu.memory_space<vmem>>, %arg3: memref<32x1xf32, #tpu.memory_space<vmem>>, %arg4: memref<3x32xbf16, #tpu.memory_space<vmem>>, %arg5: memref<32x32xbf16, #tpu.memory_space<vmem>>, %arg6: memref<1x32xf32, #tpu.memory_space<vmem>>, %arg7: memref<4x32x32xbf16, #tpu.memory_space<vmem>>, %arg8: memref<32x32xbf16, #tpu.memory_space<vmem>>, %arg9: memref<1x32xf32, #tpu.memory_space<vmem>>, %arg10: memref<96x32xbf16, #tpu.memory_space<vmem>>, %arg11: memref<1x32xf32, #tpu.memory_space<vmem>>, %arg12: memref<32x8xbf16, #tpu.memory_space<vmem>>, %arg13: memref<1x8xf32, #tpu.memory_space<vmem>>, %arg14: memref<3x8xf32, #tpu.memory_space<vmem>>) attributes {dimension_semantics = [], scalar_prefetch = 0 : i64, scratch_operands = 0 : i64, tpu.core_type = #tpu.core_type<tc>} {
    %c0 = arith.constant 0 : index
    %c0_0 = arith.constant 0 : index
    %0 = vector.load %arg0[%c0, %c0_0] : memref<32x16xf32, #tpu.memory_space<vmem>>, vector<32x16xf32>
    %1 = arith.truncf %0 : vector<32x16xf32> to vector<32x16xbf16>
    %c0_1 = arith.constant 0 : index
    %c0_2 = arith.constant 0 : index
    %2 = vector.load %arg1[%c0_1, %c0_2] : memref<32x32xbf16, #tpu.memory_space<vmem>>, vector<32x32xbf16>
    %cst = arith.constant dense<0.000000e+00> : vector<32x16xf32>
    %3 = tpu.matmul %2, %1, %cst {dimension_numbers = #tpu.dot_dimension_numbers<[1], [0], [0], [1], [0, 0, 1, 1], [], []>} : vector<32x32xbf16>, vector<32x16xbf16>, vector<32x16xf32> -> vector<32x16xf32>
    %4 = arith.truncf %3 : vector<32x16xf32> to vector<32x16xbf16>
    %5 = tpu.concatenate %1, %4 in 1 : vector<32x16xbf16>, vector<32x16xbf16> -> vector<32x32xbf16>
    %c0_3 = arith.constant 0 : index
    %c0_4 = arith.constant 0 : index
    %6 = vector.load %arg5[%c0_3, %c0_4] : memref<32x32xbf16, #tpu.memory_space<vmem>>, vector<32x32xbf16>
    %cst_5 = arith.constant dense<0.000000e+00> : vector<32x32xf32>
    %7 = tpu.matmul %5, %6, %cst_5 {dimension_numbers = #tpu.dot_dimension_numbers<[1], [0], [0], [1], [0, 0, 1, 1], [], []>} : vector<32x32xbf16>, vector<32x32xbf16>, vector<32x32xf32> -> vector<32x32xf32>
    %c0_6 = arith.constant 0 : index
    %c0_7 = arith.constant 0 : index
    %8 = vector.load %arg6[%c0_6, %c0_7] : memref<1x32xf32, #tpu.memory_space<vmem>>, vector<1x32xf32>
    %9 = vector.broadcast %8 : vector<1x32xf32> to vector<32x32xf32>
    %10 = arith.addf %7, %9 : vector<32x32xf32>
    %11 = arith.truncf %10 : vector<32x32xf32> to vector<32x32xbf16>
    %c0_8 = arith.constant 0 : index
    %c0_9 = arith.constant 0 : index
    %12 = vector.load %arg2[%c0_8, %c0_9] : memref<128x32xbf16, #tpu.memory_space<vmem>>, vector<128x32xbf16>
    %cst_10 = arith.constant dense<0.000000e+00> : vector<128x32xf32>
    %13 = tpu.matmul %12, %11, %cst_10 {dimension_numbers = #tpu.dot_dimension_numbers<[1], [0], [0], [1], [0, 0, 1, 1], [], []>} : vector<128x32xbf16>, vector<32x32xbf16>, vector<128x32xf32> -> vector<128x32xf32>
    %14 = vector.shape_cast %13 : vector<128x32xf32> to vector<4x32x32xf32>
    %15 = arith.truncf %14 : vector<4x32x32xf32> to vector<4x32x32xbf16>
    %c0_11 = arith.constant 0 : index
    %c0_12 = arith.constant 0 : index
    %c0_13 = arith.constant 0 : index
    %16 = vector.load %arg7[%c0_11, %c0_12, %c0_13] : memref<4x32x32xbf16, #tpu.memory_space<vmem>>, vector<4x32x32xbf16>
    %cst_14 = arith.constant dense<0.000000e+00> : vector<4x32x32xf32>
    %17 = tpu.matmul %15, %16, %cst_14 {dimension_numbers = #tpu.dot_dimension_numbers<[2], [1], [1], [2], [0, 0, 0, 1, 1, 2], [0], [0]>} : vector<4x32x32xbf16>, vector<4x32x32xbf16>, vector<4x32x32xf32> -> vector<4x32x32xf32>
    %cst_15 = arith.constant dense<0.000000e+00> : vector<32x32xf32>
    %18 = vector.multi_reduction <add>, %17, %cst_15 [0] : vector<4x32x32xf32> to vector<32x32xf32>
    %c0_16 = arith.constant 0 : index
    %c0_17 = arith.constant 0 : index
    %19 = vector.load %arg3[%c0_16, %c0_17] : memref<32x1xf32, #tpu.memory_space<vmem>>, vector<32x1xf32>
    %20 = vector.broadcast %19 : vector<32x1xf32> to vector<32x32xf32>
    %21 = arith.mulf %18, %20 : vector<32x32xf32>
    %c0_18 = arith.constant 0 : index
    %c0_19 = arith.constant 0 : index
    %22 = vector.load %arg8[%c0_18, %c0_19] : memref<32x32xbf16, #tpu.memory_space<vmem>>, vector<32x32xbf16>
    %cst_20 = arith.constant dense<0.000000e+00> : vector<32x32xf32>
    %23 = tpu.matmul %11, %22, %cst_20 {dimension_numbers = #tpu.dot_dimension_numbers<[1], [0], [0], [1], [0, 0, 1, 1], [], []>} : vector<32x32xbf16>, vector<32x32xbf16>, vector<32x32xf32> -> vector<32x32xf32>
    %24 = arith.addf %21, %23 : vector<32x32xf32>
    %c0_21 = arith.constant 0 : index
    %c0_22 = arith.constant 0 : index
    %25 = vector.load %arg9[%c0_21, %c0_22] : memref<1x32xf32, #tpu.memory_space<vmem>>, vector<1x32xf32>
    %26 = vector.broadcast %25 : vector<1x32xf32> to vector<32x32xf32>
    %27 = arith.addf %24, %26 : vector<32x32xf32>
    %28 = arith.truncf %27 : vector<32x32xf32> to vector<32x32xbf16>
    %29 = tpu.concatenate %1, %28 in 1 : vector<32x16xbf16>, vector<32x32xbf16> -> vector<32x48xbf16>
    %c0_23 = arith.constant 0 : index
    %c0_24 = arith.constant 0 : index
    %30 = vector.load %arg4[%c0_23, %c0_24] : memref<3x32xbf16, #tpu.memory_space<vmem>>, vector<3x32xbf16>
    %cst_25 = arith.constant dense<0.000000e+00> : vector<3x48xf32>
    %31 = tpu.matmul %30, %29, %cst_25 {dimension_numbers = #tpu.dot_dimension_numbers<[1], [0], [0], [1], [0, 0, 1, 1], [], []>} : vector<3x32xbf16>, vector<32x48xbf16>, vector<3x48xf32> -> vector<3x48xf32>
    %32 = tpu.concatenate %0, %27 in 1 : vector<32x16xf32>, vector<32x32xf32> -> vector<32x48xf32>
    %33 = vector.extract_strided_slice %32 {offsets = [0, 0], sizes = [8, 48], strides = [1, 1]} : vector<32x48xf32> to vector<8x48xf32>
    %cst_26 = arith.constant dense<0xFF800000> : vector<48xf32>
    %34 = vector.multi_reduction <maximumf>, %33, %cst_26 [0] : vector<8x48xf32> to vector<48xf32>
    %35 = vector.shape_cast %34 : vector<48xf32> to vector<1x48xf32>
    %36 = vector.extract_strided_slice %32 {offsets = [8, 0], sizes = [8, 48], strides = [1, 1]} : vector<32x48xf32> to vector<8x48xf32>
    %cst_27 = arith.constant dense<0xFF800000> : vector<48xf32>
    %37 = vector.multi_reduction <maximumf>, %36, %cst_27 [0] : vector<8x48xf32> to vector<48xf32>
    %38 = vector.shape_cast %37 : vector<48xf32> to vector<1x48xf32>
    %39 = vector.extract_strided_slice %32 {offsets = [16, 0], sizes = [8, 48], strides = [1, 1]} : vector<32x48xf32> to vector<8x48xf32>
    %cst_28 = arith.constant dense<0xFF800000> : vector<48xf32>
    %40 = vector.multi_reduction <maximumf>, %39, %cst_28 [0] : vector<8x48xf32> to vector<48xf32>
    %41 = vector.shape_cast %40 : vector<48xf32> to vector<1x48xf32>
    %42 = tpu.concatenate %35, %38, %41 in 0 : vector<1x48xf32>, vector<1x48xf32>, vector<1x48xf32> -> vector<3x48xf32>
    %43 = tpu.concatenate %31, %42 in 1 : vector<3x48xf32>, vector<3x48xf32> -> vector<3x96xf32>
    %44 = arith.truncf %43 : vector<3x96xf32> to vector<3x96xbf16>
    %c0_29 = arith.constant 0 : index
    %c0_30 = arith.constant 0 : index
    %45 = vector.load %arg10[%c0_29, %c0_30] : memref<96x32xbf16, #tpu.memory_space<vmem>>, vector<96x32xbf16>
    %cst_31 = arith.constant dense<0.000000e+00> : vector<3x32xf32>
    %46 = tpu.matmul %44, %45, %cst_31 {dimension_numbers = #tpu.dot_dimension_numbers<[1], [0], [0], [1], [0, 0, 1, 1], [], []>} : vector<3x96xbf16>, vector<96x32xbf16>, vector<3x32xf32> -> vector<3x32xf32>
    %c0_32 = arith.constant 0 : index
    %c0_33 = arith.constant 0 : index
    %47 = vector.load %arg11[%c0_32, %c0_33] : memref<1x32xf32, #tpu.memory_space<vmem>>, vector<1x32xf32>
    %48 = vector.broadcast %47 : vector<1x32xf32> to vector<3x32xf32>
    %49 = arith.addf %46, %48 : vector<3x32xf32>
    %cst_34 = arith.constant 0.000000e+00 : f32
    %50 = vector.broadcast %cst_34 : f32 to vector<3x32xf32>
    %51 = arith.maximumf %49, %50 : vector<3x32xf32>
    %52 = arith.truncf %51 : vector<3x32xf32> to vector<3x32xbf16>
    %c0_35 = arith.constant 0 : index
    %c0_36 = arith.constant 0 : index
    %53 = vector.load %arg12[%c0_35, %c0_36] : memref<32x8xbf16, #tpu.memory_space<vmem>>, vector<32x8xbf16>
    %cst_37 = arith.constant dense<0.000000e+00> : vector<3x8xf32>
    %54 = tpu.matmul %52, %53, %cst_37 {dimension_numbers = #tpu.dot_dimension_numbers<[1], [0], [0], [1], [0, 0, 1, 1], [], []>} : vector<3x32xbf16>, vector<32x8xbf16>, vector<3x8xf32> -> vector<3x8xf32>
    %c0_38 = arith.constant 0 : index
    %c0_39 = arith.constant 0 : index
    %55 = vector.load %arg13[%c0_38, %c0_39] : memref<1x8xf32, #tpu.memory_space<vmem>>, vector<1x8xf32>
    %56 = vector.broadcast %55 : vector<1x8xf32> to vector<3x8xf32>
    %57 = arith.addf %54, %56 : vector<3x8xf32>
    %cst_40 = arith.constant dense<0xFF800000> : vector<3xf32>
    %58 = vector.multi_reduction <maximumf>, %57, %cst_40 [1] : vector<3x8xf32> to vector<3xf32>
    %59 = vector.shape_cast %58 : vector<3xf32> to vector<3x1xf32>
    %60 = vector.broadcast %59 : vector<3x1xf32> to vector<3x8xf32>
    %61 = arith.subf %57, %60 : vector<3x8xf32>
    %62 = math.exp %61 : vector<3x8xf32>
    %cst_41 = arith.constant dense<0.000000e+00> : vector<3xf32>
    %63 = vector.multi_reduction <add>, %62, %cst_41 [1] : vector<3x8xf32> to vector<3xf32>
    %64 = vector.shape_cast %63 : vector<3xf32> to vector<3x1xf32>
    %65 = math.log %64 : vector<3x1xf32>
    %66 = vector.broadcast %65 : vector<3x1xf32> to vector<3x8xf32>
    %67 = arith.subf %61, %66 : vector<3x8xf32>
    %c0_42 = arith.constant 0 : index
    %c0_43 = arith.constant 0 : index
    %68 = vector.load %arg14[%c0_42, %c0_43] : memref<3x8xf32, #tpu.memory_space<vmem>>, vector<3x8xf32>
    tpu.vector_store %arg14[%c0_42, %c0_43], %67 {strides = array<i32>} : memref<3x8xf32, #tpu.memory_space<vmem>>, vector<3x8xf32>,
    return
  }
}

</mosaic_0001>

<llo_original>
// kernel: graph_network_forward.1
$region0: #{graph_network_forward.1}
  #allocation0 [shape = 'u32[]', space=smem, size = 0x4, offset = 0x4, fixed_abs, tag = 'smem constant byte address 0x4 - core index']
  #allocation1 [shape = 'u32[144,128]{1,0:T(1,128)}', space=vmem, size = 0x12000, scoped, tag = 'internal scratch']
  %s0 = inlined_call_operand.vmem [shape: f32[32,16], index: 0, kind: input, shape index: {}]
  %s1 = inlined_call_operand.vmem [shape: bf16[32,32], index: 1, kind: input, shape index: {}]
  %s2 = inlined_call_operand.vmem [shape: bf16[128,32], index: 2, kind: input, shape index: {}]
  %s3 = inlined_call_operand.vmem [shape: f32[32,1], index: 3, kind: input, shape index: {}]
  %s4 = inlined_call_operand.vmem [shape: bf16[3,32], index: 4, kind: input, shape index: {}]
  %s5 = inlined_call_operand.vmem [shape: bf16[32,32], index: 5, kind: input, shape index: {}]
  %s6 = inlined_call_operand.vmem [shape: f32[1,32], index: 6, kind: input, shape index: {}]
  %s7 = inlined_call_operand.vmem [shape: bf16[4,32,32], index: 7, kind: input, shape index: {}]
  %s8 = inlined_call_operand.vmem [shape: bf16[32,32], index: 8, kind: input, shape index: {}]
  %s9 = inlined_call_operand.vmem [shape: f32[1,32], index: 9, kind: input, shape index: {}]
  %s10 = inlined_call_operand.vmem [shape: bf16[96,32], index: 10, kind: input, shape index: {}]
  %s11 = inlined_call_operand.vmem [shape: f32[1,32], index: 11, kind: input, shape index: {}]
  %s12 = inlined_call_operand.vmem [shape: bf16[32,8], index: 12, kind: input, shape index: {}]
  %s13 = inlined_call_operand.vmem [shape: f32[1,8], index: 13, kind: input, shape index: {}]
  %s14 = inlined_call_operand.hbm [shape: f32[3,8], index: 14, kind: output, shape index: {}]
  %s15 = sld [smem:[#allocation0]]
  $region66: #{graph_network_forward.1} parent=0
    _
  %s17 = ssub.s32 1, %s15
  %s18 = scalar_select 0, %s17, %s15
  $region1: #{graph_network_forward.1} parent=0
    #allocation2 [shape = 'u8[2048]{0}', space=vmem, size = 0x800, scoped, tag = 'output window, operand 0, single buffered']
    #allocation3 [shape = 's32[1]{0}', space=sflag, size = 0x4, scoped, tag = 'scoped memory for graph_network_forward.1']
    %19 = vsyncpa [#allocation3], 0
    // Predicated region
    $region2: #{graph_network_forward.1} parent=1 // pred_check
      _
    $region3: #{graph_network_forward.1} parent=1 // pred_check_branch
      %21 = sbr.rel (0) target = $region5
    $region4: #{graph_network_forward.1} parent=1 // pred_region
      _
    $region5: #{graph_network_forward.1} parent=1 // pred_fallthru
      _
    // Predicated region
    $region6: #{graph_network_forward.1} parent=1 // pred_check
      _
    $region7: #{graph_network_forward.1} parent=1 // pred_check_branch
      %23 = sbr.rel (0) target = $region9
    $region8: #{graph_network_forward.1} parent=1 // pred_region
      _
    $region9: #{graph_network_forward.1} parent=1 // pred_fallthru
      _
    // Predicated region
    $region10: #{graph_network_forward.1} parent=1 // pred_check
      _
    $region11: #{graph_network_forward.1} parent=1 // pred_check_branch
      %25 = sbr.rel (0) target = $region13
    $region12: #{graph_network_forward.1} parent=1 // pred_region
      _
    $region13: #{graph_network_forward.1} parent=1 // pred_fallthru
      _
    // Predicated region
    $region14: #{graph_network_forward.1} parent=1 // pred_check
      _
    $region15: #{graph_network_forward.1} parent=1 // pred_check_branch
      %27 = sbr.rel (0) target = $region17
    $region16: #{graph_network_forward.1} parent=1 // pred_region
      _
    $region17: #{graph_network_forward.1} parent=1 // pred_fallthru
      _
    // Predicated region
    $region18: #{graph_network_forward.1} parent=1 // pred_check
      _
    $region19: #{graph_network_forward.1} parent=1 // pred_check_branch
      %29 = sbr.rel (0) target = $region21
    $region20: #{graph_network_forward.1} parent=1 // pred_region
      _
    $region21: #{graph_network_forward.1} parent=1 // pred_fallthru
      _
    // Predicated region
    $region22: #{graph_network_forward.1} parent=1 // pred_check
      _
    $region23: #{graph_network_forward.1} parent=1 // pred_check_branch
      %31 = sbr.rel (0) target = $region25
    $region24: #{graph_network_forward.1} parent=1 // pred_region
      _
    $region25: #{graph_network_forward.1} parent=1 // pred_fallthru
      _
    // Predicated region
    $region26: #{graph_network_forward.1} parent=1 // pred_check
      _
    $region27: #{graph_network_forward.1} parent=1 // pred_check_branch
      %33 = sbr.rel (0) target = $region29
    $region28: #{graph_network_forward.1} parent=1 // pred_region
      _
    $region29: #{graph_network_forward.1} parent=1 // pred_fallthru
      _
    // Predicated region
    $region30: #{graph_network_forward.1} parent=1 // pred_check
      _
    $region31: #{graph_network_forward.1} parent=1 // pred_check_branch
      %35 = sbr.rel (0) target = $region33
    $region32: #{graph_network_forward.1} parent=1 // pred_region
      _
    $region33: #{graph_network_forward.1} parent=1 // pred_fallthru
      _
    // Predicated region
    $region34: #{graph_network_forward.1} parent=1 // pred_check
      _
    $region35: #{graph_network_forward.1} parent=1 // pred_check_branch
      %37 = sbr.rel (0) target = $region37
    $region36: #{graph_network_forward.1} parent=1 // pred_region
      _
    $region37: #{graph_network_forward.1} parent=1 // pred_fallthru
      _
    // Predicated region
    $region38: #{graph_network_forward.1} parent=1 // pred_check
      _
    $region39: #{graph_network_forward.1} parent=1 // pred_check_branch
      %39 = sbr.rel (0) target = $region41
    $region40: #{graph_network_forward.1} parent=1 // pred_region
      _
    $region41: #{graph_network_forward.1} parent=1 // pred_fallthru
      _
    // Predicated region
    $region42: #{graph_network_forward.1} parent=1 // pred_check
      _
    $region43: #{graph_network_forward.1} parent=1 // pred_check_branch
      %41 = sbr.rel (0) target = $region45
    $region44: #{graph_network_forward.1} parent=1 // pred_region
      _
    $region45: #{graph_network_forward.1} parent=1 // pred_fallthru
      _
    // Predicated region
    $region46: #{graph_network_forward.1} parent=1 // pred_check
      _
    $region47: #{graph_network_forward.1} parent=1 // pred_check_branch
      %43 = sbr.rel (0) target = $region49
    $region48: #{graph_network_forward.1} parent=1 // pred_region
      _
    $region49: #{graph_network_forward.1} parent=1 // pred_fallthru
      _
    // Predicated region
    $region50: #{graph_network_forward.1} parent=1 // pred_check
      _
    $region51: #{graph_network_forward.1} parent=1 // pred_check_branch
      %45 = sbr.rel (0) target = $region53
    $region52: #{graph_network_forward.1} parent=1 // pred_region
      _
    $region53: #{graph_network_forward.1} parent=1 // pred_fallthru
      _
    // Predicated region
    $region54: #{graph_network_forward.1} parent=1 // pred_check
      _
    $region55: #{graph_network_forward.1} parent=1 // pred_check_branch
      %47 = sbr.rel (0) target = $region57
    $region56: #{graph_network_forward.1} parent=1 // pred_region
      _
    $region57: #{graph_network_forward.1} parent=1 // pred_fallthru
      _
    %v49 = vld [vmem:[%s0] sm:$0xff]
    %v50 = vld [vmem:[%s0 + $0x8] sm:$0xff]
    %v51 = vld [vmem:[%s0 + $0x10] sm:$0xff]
    %v52 = vld [vmem:[%s0 + $0x18] sm:$0xff]
    %v53 = vpack.c.bf16 %v50, %v49
    %v54 = vpack.c.bf16 %v52, %v51
    %v55 = vld [vmem:[%s1] sm:$0xf]
    %v56 = vld [vmem:[%s1 + $0x4] sm:$0xf]
    %v57 = vld [vmem:[%s1 + $0x8] sm:$0xf]
    %v58 = vld [vmem:[%s1 + $0xc] sm:$0xf]
    %v63 = vunpack.c.l.b16 %v55
    %v64 = vunpack.c.l.b16 %v56
    %v65 = vunpack.c.l.b16 %v57
    %v66 = vunpack.c.l.b16 %v58
    %v67 = vpack.c.b16 %v64, %v63
    %v68 = vpack.c.b16 %v66, %v65
    %vm69 = vcmask 261120
    %v71 = vsel %vm69, %v67, 0
    %v74 = vsel %vm69, %v68, 0
    %76 = vmatprep.subr.bf16.mxu0 0
    %77 = vmatpush1.bf16.msra.mxu0 %v53
    %78 = vmatprep.subr.bf16.mxu0 0
    %79 = vmatpush1.bf16.msra.mxu0 %v54
    %80 = vmatprep.subr.bf16.mxu0 0
    %81 = vmatpush1.bf16.msra.mxu0 0
    %82 = vmatprep.subr.bf16.mxu0 0
    %83 = vmatpush1.bf16.msra.mxu0 0
    %84 = vmatprep.subr.bf16.mxu0 0
    %85 = vmatpush1.bf16.msra.mxu0 0
    %86 = vmatprep.subr.bf16.mxu0 0
    %87 = vmatpush1.bf16.msra.mxu0 0
    %88 = vmatprep.subr.bf16.mxu0 0
    %89 = vmatpush1.bf16.msra.mxu0 0
    %90 = vmatprep.subr.bf16.mxu0 0
    %91 = vmatpush1.bf16.msra.mxu0 0
    %92 = vmatprep.subr.bf16.mxu0 0
    %93 = vmatpush1.bf16.msra.mxu0 0
    %94 = vmatprep.subr.bf16.mxu0 0
    %95 = vmatpush1.bf16.msra.mxu0 0
    %96 = vmatprep.subr.bf16.mxu0 0
    %97 = vmatpush1.bf16.msra.mxu0 0
    %98 = vmatprep.subr.bf16.mxu0 0
    %99 = vmatpush1.bf16.msra.mxu0 0
    %100 = vmatprep.subr.bf16.mxu0 0
    %101 = vmatpush1.bf16.msra.mxu0 0
    %102 = vmatprep.subr.bf16.mxu0 0
    %103 = vmatpush1.bf16.msra.mxu0 0
    %104 = vmatprep.subr.bf16.mxu0 0
    %105 = vmatpush1.bf16.msra.mxu0 0
    %106 = vmatprep.subr.bf16.mxu0 0
    %107 = vmatpush1.bf16.msra.mxu0 0
    %108 = vmatprep.mubr.bf16.mxu0 0
    %109 = vmatmul.mubr.bf16.gmra.mrb[0].mxu0 %v71
    %v110 = vpop.f32.mrb[0].mxu0
    %v111 = vadd.f32 0.0, %v110
    %v112 = vpop.f32.mrb[0].mxu0
    %v113 = vpop.f32.mrb[0].mxu0
    %v114 = vadd.f32 0.0, %v113
    %v115 = vpop.f32.mrb[0].mxu0
    %116 = vmatprep.mubr.bf16.mxu0 0
    %117 = vmatmul.mubr.bf16.gmra.mrb[0].mxu0 %v74
    %v118 = vpop.f32.mrb[0].mxu0
    %v119 = vadd.f32 0.0, %v118
    %v120 = vpop.f32.mrb[0].mxu0
    %v121 = vpop.f32.mrb[0].mxu0
    %v122 = vadd.f32 0.0, %v121
    %v123 = vpop.f32.mrb[0].mxu0
    %124 = vdwg.mxu0
    %v125 = vpack.c.bf16 %v114, %v111
    %v126 = vpack.c.bf16 %v122, %v119
    %129 = vrot.lane.b32.xlu0 %v125, 16
    %v130 = vpop.permute.xlu0 %129
    %131 = vrot.lane.b32.xlu0 %v126, 16
    %v132 = vpop.permute.xlu0 %131
    %vm133 = vcmask 130048
    %v136 = vsel %vm133, %v53, %v130
    %v139 = vsel %vm133, %v54, %v132
    %v140 = vld [vmem:[%s5] sm:$0xf]
    %v141 = vld [vmem:[%s5 + $0x4] sm:$0xf]
    %v142 = vld [vmem:[%s5 + $0x8] sm:$0xf]
    %v143 = vld [vmem:[%s5 + $0xc] sm:$0xf]
    %v144 = vld [vmem:[%s6] sm:$0x1]
    %v146 = vlaneseq
    %v147 = vshrl.u32 %v146, 7
    %v148 = vsub.s32 0, %v147
    %v149 = vrot.slane %v144, %v148
    %v155 = vunpack.c.l.b16 %v140
    %v156 = vunpack.c.l.b16 %v141
    %v157 = vunpack.c.l.b16 %v142
    %v158 = vunpack.c.l.b16 %v143
    %v159 = vpack.c.b16 %v156, %v155
    %v160 = vpack.c.b16 %v158, %v157
    %v163 = vsel %vm69, %v136, 0
    %v165 = vsel %vm69, %v139, 0
    %167 = vmatprep.subr.bf16.mxu0 0
    %168 = vmatpush1.bf16.msra.mxu0 %v159
    %169 = vmatprep.subr.bf16.mxu0 0
    %170 = vmatpush1.bf16.msra.mxu0 %v160
    %171 = vmatprep.subr.bf16.mxu0 0
    %172 = vmatpush1.bf16.msra.mxu0 0
    %173 = vmatprep.subr.bf16.mxu0 0
    %174 = vmatpush1.bf16.msra.mxu0 0
    %175 = vmatprep.subr.bf16.mxu0 0
    %176 = vmatpush1.bf16.msra.mxu0 0
    %177 = vmatprep.subr.bf16.mxu0 0
    %178 = vmatpush1.bf16.msra.mxu0 0
    %179 = vmatprep.subr.bf16.mxu0 0
    %180 = vmatpush1.bf16.msra.mxu0 0
    %181 = vmatprep.subr.bf16.mxu0 0
    %182 = vmatpush1.bf16.msra.mxu0 0
    %183 = vmatprep.subr.bf16.mxu0 0
    %184 = vmatpush1.bf16.msra.mxu0 0
    %185 = vmatprep.subr.bf16.mxu0 0
    %186 = vmatpush1.bf16.msra.mxu0 0
    %187 = vmatprep.subr.bf16.mxu0 0
    %188 = vmatpush1.bf16.msra.mxu0 0
    %189 = vmatprep.subr.bf16.mxu0 0
    %190 = vmatpush1.bf16.msra.mxu0 0
    %191 = vmatprep.subr.bf16.mxu0 0
    %192 = vmatpush1.bf16.msra.mxu0 0
    %193 = vmatprep.subr.bf16.mxu0 0
    %194 = vmatpush1.bf16.msra.mxu0 0
    %195 = vmatprep.subr.bf16.mxu0 0
    %196 = vmatpush1.bf16.msra.mxu0 0
    %197 = vmatprep.subr.bf16.mxu0 0
    %198 = vmatpush1.bf16.msra.mxu0 0
    %199 = vmatprep.mubr.bf16.mxu0 0
    %200 = vmatmul.mubr.bf16.gmra.mrb[0].mxu0 %v163
    %v201 = vpop.f32.mrb[0].mxu0
    %v202 = vadd.f32 %v149, %v201
    %v203 = vpop.f32.mrb[0].mxu0
    %v204 = vpop.f32.mrb[0].mxu0
    %v205 = vadd.f32 %v149, %v204
    %v206 = vpop.f32.mrb[0].mxu0
    %207 = vmatprep.mubr.bf16.mxu0 0
    %208 = vmatmul.mubr.bf16.gmra.mrb[0].mxu0 %v165
    %v209 = vpop.f32.mrb[0].mxu0
    %v210 = vadd.f32 %v149, %v209
    %v211 = vpop.f32.mrb[0].mxu0
    %v212 = vpop.f32.mrb[0].mxu0
    %v213 = vadd.f32 %v149, %v212
    %v214 = vpop.f32.mrb[0].mxu0
    %215 = vdwg.mxu0
    %v216 = vpack.c.bf16 %v205, %v202
    %v217 = vpack.c.bf16 %v213, %v210
    %v218 = vld [vmem:[%s2] sm:$0xf]
    %v219 = vld [vmem:[%s2 + $0x4] sm:$0xf]
    %v220 = vld [vmem:[%s2 + $0x8] sm:$0xf]
    %v221 = vld [vmem:[%s2 + $0xc] sm:$0xf]
    %v222 = vld [vmem:[%s2 + $0x10] sm:$0xf]
    %v223 = vld [vmem:[%s2 + $0x14] sm:$0xf]
    %v224 = vld [vmem:[%s2 + $0x18] sm:$0xf]
    %v225 = vld [vmem:[%s2 + $0x1c] sm:$0xf]
    %v226 = vld [vmem:[%s2 + $0x20] sm:$0xf]
    %v227 = vld [vmem:[%s2 + $0x24] sm:$0xf]
    %v228 = vld [vmem:[%s2 + $0x28] sm:$0xf]
    %v229 = vld [vmem:[%s2 + $0x2c] sm:$0xf]
    %v230 = vld [vmem:[%s2 + $0x30] sm:$0xf]
    %v231 = vld [vmem:[%s2 + $0x34] sm:$0xf]
    %v232 = vld [vmem:[%s2 + $0x38] sm:$0xf]
    %v233 = vld [vmem:[%s2 + $0x3c] sm:$0xf]
    %v250 = vunpack.c.l.b16 %v218
    %v251 = vunpack.c.l.b16 %v219
    %v252 = vunpack.c.l.b16 %v220
    %v253 = vunpack.c.l.b16 %v221
    %v254 = vunpack.c.l.b16 %v222
    %v255 = vunpack.c.l.b16 %v223
    %v256 = vunpack.c.l.b16 %v224
    %v257 = vunpack.c.l.b16 %v225
    %v258 = vunpack.c.l.b16 %v226
    %v259 = vunpack.c.l.b16 %v227
    %v260 = vunpack.c.l.b16 %v228
    %v261 = vunpack.c.l.b16 %v229
    %v262 = vunpack.c.l.b16 %v230
    %v263 = vunpack.c.l.b16 %v231
    %v264 = vunpack.c.l.b16 %v232
    %v265 = vunpack.c.l.b16 %v233
    %v266 = vpack.c.b16 %v251, %v250
    %v267 = vpack.c.b16 %v253, %v252
    %v268 = vpack.c.b16 %v255, %v254
    %v269 = vpack.c.b16 %v257, %v256
    %v270 = vpack.c.b16 %v259, %v258
    %v271 = vpack.c.b16 %v261, %v260
    %v272 = vpack.c.b16 %v263, %v262
    %v273 = vpack.c.b16 %v265, %v264
    %v275 = vsel %vm69, %v266, 0
    %v278 = vsel %vm69, %v267, 0
    %v281 = vsel %vm69, %v268, 0
    %v284 = vsel %vm69, %v269, 0
    %v287 = vsel %vm69, %v270, 0
    %v290 = vsel %vm69, %v271, 0
    %v293 = vsel %vm69, %v272, 0
    %v296 = vsel %vm69, %v273, 0
    %298 = vmatprep.subr.bf16.mxu0 0
    %299 = vmatpush1.bf16.msra.mxu0 %v216
    %300 = vmatprep.subr.bf16.mxu0 0
    %301 = vmatpush1.bf16.msra.mxu0 %v217
    %302 = vmatprep.subr.bf16.mxu0 0
    %303 = vmatpush1.bf16.msra.mxu0 0
    %304 = vmatprep.subr.bf16.mxu0 0
    %305 = vmatpush1.bf16.msra.mxu0 0
    %306 = vmatprep.subr.bf16.mxu0 0
    %307 = vmatpush1.bf16.msra.mxu0 0
    %308 = vmatprep.subr.bf16.mxu0 0
    %309 = vmatpush1.bf16.msra.mxu0 0
    %310 = vmatprep.subr.bf16.mxu0 0
    %311 = vmatpush1.bf16.msra.mxu0 0
    %312 = vmatprep.subr.bf16.mxu0 0
    %313 = vmatpush1.bf16.msra.mxu0 0
    %314 = vmatprep.subr.bf16.mxu0 0
    %315 = vmatpush1.bf16.msra.mxu0 0
    %316 = vmatprep.subr.bf16.mxu0 0
    %317 = vmatpush1.bf16.msra.mxu0 0
    %318 = vmatprep.subr.bf16.mxu0 0
    %319 = vmatpush1.bf16.msra.mxu0 0
    %320 = vmatprep.subr.bf16.mxu0 0
    %321 = vmatpush1.bf16.msra.mxu0 0
    %322 = vmatprep.subr.bf16.mxu0 0
    %323 = vmatpush1.bf16.msra.mxu0 0
    %324 = vmatprep.subr.bf16.mxu0 0
    %325 = vmatpush1.bf16.msra.mxu0 0
    %326 = vmatprep.subr.bf16.mxu0 0
    %327 = vmatpush1.bf16.msra.mxu0 0
    %328 = vmatprep.subr.bf16.mxu0 0
    %329 = vmatpush1.bf16.msra.mxu0 0
    %330 = vmatprep.mubr.bf16.mxu0 0
    %331 = vmatmul.mubr.bf16.gmra.mrb[0].mxu0 %v275
    %v332 = vpop.f32.mrb[0].mxu0
    %v333 = vadd.f32 0.0, %v332
    %v334 = vpop.f32.mrb[0].mxu0
    %v335 = vpop.f32.mrb[0].mxu0
    %v336 = vadd.f32 0.0, %v335
    %v337 = vpop.f32.mrb[0].mxu0
    %338 = vmatprep.mubr.bf16.mxu0 0
    %339 = vmatmul.mubr.bf16.gmra.mrb[0].mxu0 %v278
    %v340 = vpop.f32.mrb[0].mxu0
    %v341 = vadd.f32 0.0, %v340
    %v342 = vpop.f32.mrb[0].mxu0
    %v343 = vpop.f32.mrb[0].mxu0
    %v344 = vadd.f32 0.0, %v343
    %v345 = vpop.f32.mrb[0].mxu0
    %346 = vmatprep.mubr.bf16.mxu0 0
    %347 = vmatmul.mubr.bf16.gmra.mrb[0].mxu0 %v281
    %v348 = vpop.f32.mrb[0].mxu0
    %v349 = vadd.f32 0.0, %v348
    %v350 = vpop.f32.mrb[0].mxu0
    %v351 = vpop.f32.mrb[0].mxu0
    %v352 = vadd.f32 0.0, %v351
    %v353 = vpop.f32.mrb[0].mxu0
    %354 = vmatprep.mubr.bf16.mxu0 0
    %355 = vmatmul.mubr.bf16.gmra.mrb[0].mxu0 %v284
    %v356 = vpop.f32.mrb[0].mxu0
    %v357 = vadd.f32 0.0, %v356
    %v358 = vpop.f32.mrb[0].mxu0
    %v359 = vpop.f32.mrb[0].mxu0
    %v360 = vadd.f32 0.0, %v359
    %v361 = vpop.f32.mrb[0].mxu0
    %362 = vmatprep.mubr.bf16.mxu0 0
    %363 = vmatmul.mubr.bf16.gmra.mrb[0].mxu0 %v287
    %v364 = vpop.f32.mrb[0].mxu0
    %v365 = vadd.f32 0.0, %v364
    %v366 = vpop.f32.mrb[0].mxu0
    %v367 = vpop.f32.mrb[0].mxu0
    %v368 = vadd.f32 0.0, %v367
    %v369 = vpop.f32.mrb[0].mxu0
    %370 = vmatprep.mubr.bf16.mxu0 0
    %371 = vmatmul.mubr.bf16.gmra.mrb[0].mxu0 %v290
    %v372 = vpop.f32.mrb[0].mxu0
    %v373 = vadd.f32 0.0, %v372
    %v374 = vpop.f32.mrb[0].mxu0
    %v375 = vpop.f32.mrb[0].mxu0
    %v376 = vadd.f32 0.0, %v375
    %v377 = vpop.f32.mrb[0].mxu0
    %378 = vmatprep.mubr.bf16.mxu0 0
    %379 = vmatmul.mubr.bf16.gmra.mrb[0].mxu0 %v293
    %v380 = vpop.f32.mrb[0].mxu0
    %v381 = vadd.f32 0.0, %v380
    %v382 = vpop.f32.mrb[0].mxu0
    %v383 = vpop.f32.mrb[0].mxu0
    %v384 = vadd.f32 0.0, %v383
    %v385 = vpop.f32.mrb[0].mxu0
    %386 = vmatprep.mubr.bf16.mxu0 0
    %387 = vmatmul.mubr.bf16.gmra.mrb[0].mxu0 %v296
    %v388 = vpop.f32.mrb[0].mxu0
    %v389 = vadd.f32 0.0, %v388
    %v390 = vpop.f32.mrb[0].mxu0
    %v391 = vpop.f32.mrb[0].mxu0
    %v392 = vadd.f32 0.0, %v391
    %v393 = vpop.f32.mrb[0].mxu0
    %394 = vdwg.mxu0
    %v395 = vpack.c.bf16 %v336, %v333
    %v396 = vpack.c.bf16 %v344, %v341
    %v397 = vpack.c.bf16 %v352, %v349
    %v398 = vpack.c.bf16 %v360, %v357
    %v399 = vpack.c.bf16 %v368, %v365
    %v400 = vpack.c.bf16 %v376, %v373
    %v401 = vpack.c.bf16 %v384, %v381
    %v402 = vpack.c.bf16 %v392, %v389
    %v403 = vld [vmem:[%s7] sm:$0xf]
    %v404 = vld [vmem:[%s7 + $0x4] sm:$0xf]
    %v405 = vld [vmem:[%s7 + $0x8] sm:$0xf]
    %v406 = vld [vmem:[%s7 + $0xc] sm:$0xf]
    %v407 = vld [vmem:[%s7 + $0x10] sm:$0xf]
    %v408 = vld [vmem:[%s7 + $0x14] sm:$0xf]
    %v409 = vld [vmem:[%s7 + $0x18] sm:$0xf]
    %v410 = vld [vmem:[%s7 + $0x1c] sm:$0xf]
    %v411 = vld [vmem:[%s7 + $0x20] sm:$0xf]
    %v412 = vld [vmem:[%s7 + $0x24] sm:$0xf]
    %v413 = vld [vmem:[%s7 + $0x28] sm:$0xf]
    %v414 = vld [vmem:[%s7 + $0x2c] sm:$0xf]
    %v415 = vld [vmem:[%s7 + $0x30] sm:$0xf]
    %v416 = vld [vmem:[%s7 + $0x34] sm:$0xf]
    %v417 = vld [vmem:[%s7 + $0x38] sm:$0xf]
    %v418 = vld [vmem:[%s7 + $0x3c] sm:$0xf]
    %v423 = vunpack.c.l.b16 %v403
    %v424 = vunpack.c.l.b16 %v404
    %v425 = vunpack.c.l.b16 %v405
    %v426 = vunpack.c.l.b16 %v406
    %v427 = vpack.c.b16 %v424, %v423
    %v428 = vpack.c.b16 %v426, %v425
    %v432 = vsel %vm69, %v395, 0
    %v435 = vsel %vm69, %v396, 0
    %437 = vmatprep.subr.bf16.mxu0 0
    %438 = vmatpush1.bf16.msra.mxu0 %v427
    %439 = vmatprep.subr.bf16.mxu0 0
    %440 = vmatpush1.bf16.msra.mxu0 %v428
    %441 = vmatprep.subr.bf16.mxu0 0
    %442 = vmatpush1.bf16.msra.mxu0 0
    %443 = vmatprep.subr.bf16.mxu0 0
    %444 = vmatpush1.bf16.msra.mxu0 0
    %445 = vmatprep.subr.bf16.mxu0 0
    %446 = vmatpush1.bf16.msra.mxu0 0
    %447 = vmatprep.subr.bf16.mxu0 0
    %448 = vmatpush1.bf16.msra.mxu0 0
    %449 = vmatprep.subr.bf16.mxu0 0
    %450 = vmatpush1.bf16.msra.mxu0 0
    %451 = vmatprep.subr.bf16.mxu0 0
    %452 = vmatpush1.bf16.msra.mxu0 0
    %453 = vmatprep.subr.bf16.mxu0 0
    %454 = vmatpush1.bf16.msra.mxu0 0
    %455 = vmatprep.subr.bf16.mxu0 0
    %456 = vmatpush1.bf16.msra.mxu0 0
    %457 = vmatprep.subr.bf16.mxu0 0
    %458 = vmatpush1.bf16.msra.mxu0 0
    %459 = vmatprep.subr.bf16.mxu0 0
    %460 = vmatpush1.bf16.msra.mxu0 0
    %461 = vmatprep.subr.bf16.mxu0 0
    %462 = vmatpush1.bf16.msra.mxu0 0
    %463 = vmatprep.subr.bf16.mxu0 0
    %464 = vmatpush1.bf16.msra.mxu0 0
    %465 = vmatprep.subr.bf16.mxu0 0
    %466 = vmatpush1.bf16.msra.mxu0 0
    %467 = vmatprep.subr.bf16.mxu0 0
    %468 = vmatpush1.bf16.msra.mxu0 0
    %469 = vmatprep.mubr.bf16.mxu0 0
    %470 = vmatmul.mubr.bf16.gmra.mrb[0].mxu0 %v432
    %v471 = vpop.f32.mrb[0].mxu0
    %v472 = vadd.f32 0.0, %v471
    %v473 = vpop.f32.mrb[0].mxu0
    %v474 = vpop.f32.mrb[0].mxu0
    %v475 = vadd.f32 0.0, %v474
    %v476 = vpop.f32.mrb[0].mxu0
    %477 = vmatprep.mubr.bf16.mxu0 0
    %478 = vmatmul.mubr.bf16.gmra.mrb[0].mxu0 %v435
    %v479 = vpop.f32.mrb[0].mxu0
    %v480 = vadd.f32 0.0, %v479
    %v481 = vpop.f32.mrb[0].mxu0
    %v482 = vpop.f32.mrb[0].mxu0
    %v483 = vadd.f32 0.0, %v482
    %v484 = vpop.f32.mrb[0].mxu0
    %485 = vdwg.mxu0
    %v490 = vunpack.c.l.b16 %v407
    %v491 = vunpack.c.l.b16 %v408
    %v492 = vunpack.c.l.b16 %v409
    %v493 = vunpack.c.l.b16 %v410
    %v494 = vpack.c.b16 %v491, %v490
    %v495 = vpack.c.b16 %v493, %v492
    %v499 = vsel %vm69, %v397, 0
    %v502 = vsel %vm69, %v398, 0
    %504 = vmatprep.subr.bf16.mxu0 0
    %505 = vmatpush1.bf16.msra.mxu0 %v494
    %506 = vmatprep.subr.bf16.mxu0 0
    %507 = vmatpush1.bf16.msra.mxu0 %v495
    %508 = vmatprep.subr.bf16.mxu0 0
    %509 = vmatpush1.bf16.msra.mxu0 0
    %510 = vmatprep.subr.bf16.mxu0 0
    %511 = vmatpush1.bf16.msra.mxu0 0
    %512 = vmatprep.subr.bf16.mxu0 0
    %513 = vmatpush1.bf16.msra.mxu0 0
    %514 = vmatprep.subr.bf16.mxu0 0
    %515 = vmatpush1.bf16.msra.mxu0 0
    %516 = vmatprep.subr.bf16.mxu0 0
    %517 = vmatpush1.bf16.msra.mxu0 0
    %518 = vmatprep.subr.bf16.mxu0 0
    %519 = vmatpush1.bf16.msra.mxu0 0
    %520 = vmatprep.subr.bf16.mxu0 0
    %521 = vmatpush1.bf16.msra.mxu0 0
    %522 = vmatprep.subr.bf16.mxu0 0
    %523 = vmatpush1.bf16.msra.mxu0 0
    %524 = vmatprep.subr.bf16.mxu0 0
    %525 = vmatpush1.bf16.msra.mxu0 0
    %526 = vmatprep.subr.bf16.mxu0 0
    %527 = vmatpush1.bf16.msra.mxu0 0
    %528 = vmatprep.subr.bf16.mxu0 0
    %529 = vmatpush1.bf16.msra.mxu0 0
    %530 = vmatprep.subr.bf16.mxu0 0
    %531 = vmatpush1.bf16.msra.mxu0 0
    %532 = vmatprep.subr.bf16.mxu0 0
    %533 = vmatpush1.bf16.msra.mxu0 0
    %534 = vmatprep.subr.bf16.mxu0 0
    %535 = vmatpush1.bf16.msra.mxu0 0
    %536 = vmatprep.mubr.bf16.mxu0 0
    %537 = vmatmul.mubr.bf16.gmra.mrb[0].mxu0 %v499
    %v538 = vpop.f32.mrb[0].mxu0
    %v539 = vadd.f32 0.0, %v538
    %v540 = vpop.f32.mrb[0].mxu0
    %v541 = vpop.f32.mrb[0].mxu0
    %v542 = vadd.f32 0.0, %v541
    %v543 = vpop.f32.mrb[0].mxu0
    %544 = vmatprep.mubr.bf16.mxu0 0
    %545 = vmatmul.mubr.bf16.gmra.mrb[0].mxu0 %v502
    %v546 = vpop.f32.mrb[0].mxu0
    %v547 = vadd.f32 0.0, %v546
    %v548 = vpop.f32.mrb[0].mxu0
    %v549 = vpop.f32.mrb[0].mxu0
    %v550 = vadd.f32 0.0, %v549
    %v551 = vpop.f32.mrb[0].mxu0
    %552 = vdwg.mxu0
    %v557 = vunpack.c.l.b16 %v411
    %v558 = vunpack.c.l.b16 %v412
    %v559 = vunpack.c.l.b16 %v413
    %v560 = vunpack.c.l.b16 %v414
    %v561 = vpack.c.b16 %v558, %v557
    %v562 = vpack.c.b16 %v560, %v559
    %v566 = vsel %vm69, %v399, 0
    %v569 = vsel %vm69, %v400, 0
    %571 = vmatprep.subr.bf16.mxu0 0
    %572 = vmatpush1.bf16.msra.mxu0 %v561
    %573 = vmatprep.subr.bf16.mxu0 0
    %574 = vmatpush1.bf16.msra.mxu0 %v562
    %575 = vmatprep.subr.bf16.mxu0 0
    %576 = vmatpush1.bf16.msra.mxu0 0
    %577 = vmatprep.subr.bf16.mxu0 0
    %578 = vmatpush1.bf16.msra.mxu0 0
    %579 = vmatprep.subr.bf16.mxu0 0
    %580 = vmatpush1.bf16.msra.mxu0 0
    %581 = vmatprep.subr.bf16.mxu0 0
    %582 = vmatpush1.bf16.msra.mxu0 0
    %583 = vmatprep.subr.bf16.mxu0 0
    %584 = vmatpush1.bf16.msra.mxu0 0
    %585 = vmatprep.subr.bf16.mxu0 0
    %586 = vmatpush1.bf16.msra.mxu0 0
    %587 = vmatprep.subr.bf16.mxu0 0
    %588 = vmatpush1.bf16.msra.mxu0 0
    %589 = vmatprep.subr.bf16.mxu0 0
    %590 = vmatpush1.bf16.msra.mxu0 0
    %591 = vmatprep.subr.bf16.mxu0 0
    %592 = vmatpush1.bf16.msra.mxu0 0
    %593 = vmatprep.subr.bf16.mxu0 0
    %594 = vmatpush1.bf16.msra.mxu0 0
    %595 = vmatprep.subr.bf16.mxu0 0
    %596 = vmatpush1.bf16.msra.mxu0 0
    %597 = vmatprep.subr.bf16.mxu0 0
    %598 = vmatpush1.bf16.msra.mxu0 0
    %599 = vmatprep.subr.bf16.mxu0 0
    %600 = vmatpush1.bf16.msra.mxu0 0
    %601 = vmatprep.subr.bf16.mxu0 0
    %602 = vmatpush1.bf16.msra.mxu0 0
    %603 = vmatprep.mubr.bf16.mxu0 0
    %604 = vmatmul.mubr.bf16.gmra.mrb[0].mxu0 %v566
    %v605 = vpop.f32.mrb[0].mxu0
    %v606 = vadd.f32 0.0, %v605
    %v607 = vpop.f32.mrb[0].mxu0
    %v608 = vpop.f32.mrb[0].mxu0
    %v609 = vadd.f32 0.0, %v608
    %v610 = vpop.f32.mrb[0].mxu0
    %611 = vmatprep.mubr.bf16.mxu0 0
    %612 = vmatmul.mubr.bf16.gmra.mrb[0].mxu0 %v569
    %v613 = vpop.f32.mrb[0].mxu0
    %v614 = vadd.f32 0.0, %v613
    %v615 = vpop.f32.mrb[0].mxu0
    %v616 = vpop.f32.mrb[0].mxu0
    %v617 = vadd.f32 0.0, %v616
    %v618 = vpop.f32.mrb[0].mxu0
    %619 = vdwg.mxu0
    %v624 = vunpack.c.l.b16 %v415
    %v625 = vunpack.c.l.b16 %v416
    %v626 = vunpack.c.l.b16 %v417
    %v627 = vunpack.c.l.b16 %v418
    %v628 = vpack.c.b16 %v625, %v624
    %v629 = vpack.c.b16 %v627, %v626
    %v633 = vsel %vm69, %v401, 0
    %v636 = vsel %vm69, %v402, 0
    %638 = vmatprep.subr.bf16.mxu0 0
    %639 = vmatpush1.bf16.msra.mxu0 %v628
    %640 = vmatprep.subr.bf16.mxu0 0
    %641 = vmatpush1.bf16.msra.mxu0 %v629
    %642 = vmatprep.subr.bf16.mxu0 0
    %643 = vmatpush1.bf16.msra.mxu0 0
    %644 = vmatprep.subr.bf16.mxu0 0
    %645 = vmatpush1.bf16.msra.mxu0 0
    %646 = vmatprep.subr.bf16.mxu0 0
    %647 = vmatpush1.bf16.msra.mxu0 0
    %648 = vmatprep.subr.bf16.mxu0 0
    %649 = vmatpush1.bf16.msra.mxu0 0
    %650 = vmatprep.subr.bf16.mxu0 0
    %651 = vmatpush1.bf16.msra.mxu0 0
    %652 = vmatprep.subr.bf16.mxu0 0
    %653 = vmatpush1.bf16.msra.mxu0 0
    %654 = vmatprep.subr.bf16.mxu0 0
    %655 = vmatpush1.bf16.msra.mxu0 0
    %656 = vmatprep.subr.bf16.mxu0 0
    %657 = vmatpush1.bf16.msra.mxu0 0
    %658 = vmatprep.subr.bf16.mxu0 0
    %659 = vmatpush1.bf16.msra.mxu0 0
    %660 = vmatprep.subr.bf16.mxu0 0
    %661 = vmatpush1.bf16.msra.mxu0 0
    %662 = vmatprep.subr.bf16.mxu0 0
    %663 = vmatpush1.bf16.msra.mxu0 0
    %664 = vmatprep.subr.bf16.mxu0 0
    %665 = vmatpush1.bf16.msra.mxu0 0
    %666 = vmatprep.subr.bf16.mxu0 0
    %667 = vmatpush1.bf16.msra.mxu0 0
    %668 = vmatprep.subr.bf16.mxu0 0
    %669 = vmatpush1.bf16.msra.mxu0 0
    %670 = vmatprep.mubr.bf16.mxu0 0
    %671 = vmatmul.mubr.bf16.gmra.mrb[0].mxu0 %v633
    %v672 = vpop.f32.mrb[0].mxu0
    %v673 = vadd.f32 0.0, %v672
    %v674 = vpop.f32.mrb[0].mxu0
    %v675 = vpop.f32.mrb[0].mxu0
    %v676 = vadd.f32 0.0, %v675
    %v677 = vpop.f32.mrb[0].mxu0
    %678 = vmatprep.mubr.bf16.mxu0 0
    %679 = vmatmul.mubr.bf16.gmra.mrb[0].mxu0 %v636
    %v680 = vpop.f32.mrb[0].mxu0
    %v681 = vadd.f32 0.0, %v680
    %v682 = vpop.f32.mrb[0].mxu0
    %v683 = vpop.f32.mrb[0].mxu0
    %v684 = vadd.f32 0.0, %v683
    %v685 = vpop.f32.mrb[0].mxu0
    %686 = vdwg.mxu0
    %v687 = vsel %vm69, %v472, 0.0
    %v688 = vsel %vm69, %v539, 0.0
    %v689 = vadd.f32 %v687, %v688
    %v690 = vsel %vm69, %v606, 0.0
    %v691 = vadd.f32 %v689, %v690
    %v692 = vsel %vm69, %v673, 0.0
    %v693 = vadd.f32 %v691, %v692
    %v694 = vsel %vm69, %v475, 0.0
    %v695 = vsel %vm69, %v542, 0.0
    %v696 = vadd.f32 %v694, %v695
    %v697 = vsel %vm69, %v609, 0.0
    %v698 = vadd.f32 %v696, %v697
    %v699 = vsel %vm69, %v676, 0.0
    %v700 = vadd.f32 %v698, %v699
    %v701 = vsel %vm69, %v480, 0.0
    %v702 = vsel %vm69, %v547, 0.0
    %v703 = vadd.f32 %v701, %v702
    %v704 = vsel %vm69, %v614, 0.0
    %v705 = vadd.f32 %v703, %v704
    %v706 = vsel %vm69, %v681, 0.0
    %v707 = vadd.f32 %v705, %v706
    %v708 = vsel %vm69, %v483, 0.0
    %v709 = vsel %vm69, %v550, 0.0
    %v710 = vadd.f32 %v708, %v709
    %v711 = vsel %vm69, %v617, 0.0
    %v712 = vadd.f32 %v710, %v711
    %v713 = vsel %vm69, %v684, 0.0
    %v714 = vadd.f32 %v712, %v713
    %v715 = vld [vmem:[%s3] sm:$0xff]
    %v716 = vld [vmem:[%s3 + $0x8] sm:$0xff]
    %v717 = vld [vmem:[%s3 + $0x10] sm:$0xff]
    %v718 = vld [vmem:[%s3 + $0x18] sm:$0xff]
    %720 = vset.pattern.permute.xlu0 0
    %721 = vperm.xlu0 %720, %v715
    %v722 = vpop.permute.xlu0 %721
    %725 = vset.pattern.permute.xlu0 0
    %726 = vperm.xlu0 %725, %v716
    %v727 = vpop.permute.xlu0 %726
    %730 = vset.pattern.permute.xlu0 0
    %731 = vperm.xlu0 %730, %v717
    %v732 = vpop.permute.xlu0 %731
    %735 = vset.pattern.permute.xlu0 0
    %736 = vperm.xlu0 %735, %v718
    %v737 = vpop.permute.xlu0 %736
    %v739 = vmul.f32 %v693, %v722
    %v740 = vmul.f32 %v700, %v727
    %v741 = vmul.f32 %v707, %v732
    %v742 = vmul.f32 %v714, %v737
    %v743 = vld [vmem:[%s8] sm:$0xf]
    %v744 = vld [vmem:[%s8 + $0x4] sm:$0xf]
    %v745 = vld [vmem:[%s8 + $0x8] sm:$0xf]
    %v746 = vld [vmem:[%s8 + $0xc] sm:$0xf]
    %v751 = vunpack.c.l.b16 %v743
    %v752 = vunpack.c.l.b16 %v744
    %v753 = vunpack.c.l.b16 %v745
    %v754 = vunpack.c.l.b16 %v746
    %v755 = vpack.c.b16 %v752, %v751
    %v756 = vpack.c.b16 %v754, %v753
    %v760 = vsel %vm69, %v216, 0
    %v763 = vsel %vm69, %v217, 0
    %765 = vmatprep.subr.bf16.mxu0 0
    %766 = vmatpush1.bf16.msra.mxu0 %v755
    %767 = vmatprep.subr.bf16.mxu0 0
    %768 = vmatpush1.bf16.msra.mxu0 %v756
    %769 = vmatprep.subr.bf16.mxu0 0
    %770 = vmatpush1.bf16.msra.mxu0 0
    %771 = vmatprep.subr.bf16.mxu0 0
    %772 = vmatpush1.bf16.msra.mxu0 0
    %773 = vmatprep.subr.bf16.mxu0 0
    %774 = vmatpush1.bf16.msra.mxu0 0
    %775 = vmatprep.subr.bf16.mxu0 0
    %776 = vmatpush1.bf16.msra.mxu0 0
    %777 = vmatprep.subr.bf16.mxu0 0
    %778 = vmatpush1.bf16.msra.mxu0 0
    %779 = vmatprep.subr.bf16.mxu0 0
    %780 = vmatpush1.bf16.msra.mxu0 0
    %781 = vmatprep.subr.bf16.mxu0 0
    %782 = vmatpush1.bf16.msra.mxu0 0
    %783 = vmatprep.subr.bf16.mxu0 0
    %784 = vmatpush1.bf16.msra.mxu0 0
    %785 = vmatprep.subr.bf16.mxu0 0
    %786 = vmatpush1.bf16.msra.mxu0 0
    %787 = vmatprep.subr.bf16.mxu0 0
    %788 = vmatpush1.bf16.msra.mxu0 0
    %789 = vmatprep.subr.bf16.mxu0 0
    %790 = vmatpush1.bf16.msra.mxu0 0
    %791 = vmatprep.subr.bf16.mxu0 0
    %792 = vmatpush1.bf16.msra.mxu0 0
    %793 = vmatprep.subr.bf16.mxu0 0
    %794 = vmatpush1.bf16.msra.mxu0 0
    %795 = vmatprep.subr.bf16.mxu0 0
    %796 = vmatpush1.bf16.msra.mxu0 0
    %797 = vmatprep.mubr.bf16.mxu0 0
    %798 = vmatmul.mubr.bf16.gmra.mrb[0].mxu0 %v760
    %v799 = vpop.f32.mrb[0].mxu0
    %v800 = vadd.f32 0.0, %v799
    %v801 = vpop.f32.mrb[0].mxu0
    %v802 = vpop.f32.mrb[0].mxu0
    %v803 = vadd.f32 0.0, %v802
    %v804 = vpop.f32.mrb[0].mxu0
    %805 = vmatprep.mubr.bf16.mxu0 0
    %806 = vmatmul.mubr.bf16.gmra.mrb[0].mxu0 %v763
    %v807 = vpop.f32.mrb[0].mxu0
    %v808 = vadd.f32 0.0, %v807
    %v809 = vpop.f32.mrb[0].mxu0
    %v810 = vpop.f32.mrb[0].mxu0
    %v811 = vadd.f32 0.0, %v810
    %v812 = vpop.f32.mrb[0].mxu0
    %813 = vdwg.mxu0
    %v814 = vadd.f32 %v739, %v800
    %v815 = vadd.f32 %v740, %v803
    %v816 = vadd.f32 %v741, %v808
    %v817 = vadd.f32 %v742, %v811
    %v818 = vld [vmem:[%s9] sm:$0x1]
    %v820 = vlaneseq
    %v821 = vshrl.u32 %v820, 7
    %v822 = vsub.s32 0, %v821
    %v823 = vrot.slane %v818, %v822
    %v825 = vadd.f32 %v814, %v823
    %v826 = vadd.f32 %v815, %v823
    %v827 = vadd.f32 %v816, %v823
    %v828 = vadd.f32 %v817, %v823
    %v829 = vpack.c.bf16 %v826, %v825
    %v830 = vpack.c.bf16 %v828, %v827
    %833 = vrot.lane.b32.xlu0 %v829, 16
    %v834 = vpop.permute.xlu0 %833
    %835 = vrot.lane.b32.xlu0 %v830, 16
    %v836 = vpop.permute.xlu0 %835
    %v838 = vsel %vm133, %v53, %v834
    %v841 = vsel %vm133, %v54, %v836
    %v843 = vld [vmem:[%s4] sm:$0x3]
    %v845 = vsel %vm69, %v843, 0
    %847 = vmatprep.subr.bf16.mxu0 0
    %848 = vmatpush1.bf16.msra.mxu0 %v838
    %849 = vmatprep.subr.bf16.mxu0 0
    %850 = vmatpush1.bf16.msra.mxu0 %v841
    %851 = vmatprep.subr.bf16.mxu0 0
    %852 = vmatpush1.bf16.msra.mxu0 0
    %853 = vmatprep.subr.bf16.mxu0 0
    %854 = vmatpush1.bf16.msra.mxu0 0
    %855 = vmatprep.subr.bf16.mxu0 0
    %856 = vmatpush1.bf16.msra.mxu0 0
    %857 = vmatprep.subr.bf16.mxu0 0
    %858 = vmatpush1.bf16.msra.mxu0 0
    %859 = vmatprep.subr.bf16.mxu0 0
    %860 = vmatpush1.bf16.msra.mxu0 0
    %861 = vmatprep.subr.bf16.mxu0 0
    %862 = vmatpush1.bf16.msra.mxu0 0
    %863 = vmatprep.subr.bf16.mxu0 0
    %864 = vmatpush1.bf16.msra.mxu0 0
    %865 = vmatprep.subr.bf16.mxu0 0
    %866 = vmatpush1.bf16.msra.mxu0 0
    %867 = vmatprep.subr.bf16.mxu0 0
    %868 = vmatpush1.bf16.msra.mxu0 0
    %869 = vmatprep.subr.bf16.mxu0 0
    %870 = vmatpush1.bf16.msra.mxu0 0
    %871 = vmatprep.subr.bf16.mxu0 0
    %872 = vmatpush1.bf16.msra.mxu0 0
    %873 = vmatprep.subr.bf16.mxu0 0
    %874 = vmatpush1.bf16.msra.mxu0 0
    %875 = vmatprep.subr.bf16.mxu0 0
    %876 = vmatpush1.bf16.msra.mxu0 0
    %877 = vmatprep.subr.bf16.mxu0 0
    %878 = vmatpush1.bf16.msra.mxu0 0
    %879 = vmatprep.mubr.bf16.mxu0 0
    %880 = vmatmul.mubr.bf16.gmra.mrb[0].mxu0 %v845
    %v881 = vpop.f32.mrb[0].mxu0
    %v882 = vadd.f32 0.0, %v881
    %v883 = vpop.f32.mrb[0].mxu0
    %v884 = vpop.f32.mrb[0].mxu0
    %v885 = vpop.f32.mrb[0].mxu0
    %886 = vdwg.mxu0
    %890 = vrot.lane.b32.xlu0 %v825, 16
    %v891 = vpop.permute.xlu0 %890
    %892 = vrot.lane.b32.xlu0 %v826, 16
    %v893 = vpop.permute.xlu0 %892
    %894 = vrot.lane.b32.xlu0 %v827, 16
    %v895 = vpop.permute.xlu0 %894
    %v899 = vsel %vm133, %v49, %v891
    %v900 = vsel %vm133, %v50, %v893
    %v901 = vsel %vm133, %v51, %v895
    %vm902 = vcmask 392192
    %v903 = vsel %vm902, %v899, -inf
    %v904 = vrot.slane %v903, 4
    %v905 = vmax.f32 %v903, %v904
    %v906 = vrot.slane %v905, 2
    %v907 = vmax.f32 %v905, %v906
    %v908 = vrot.slane %v907, 1
    %v909 = vmax.f32 %v907, %v908
    %v910 = vsel %vm902, %v900, -inf
    %v911 = vrot.slane %v910, 4
    %v912 = vmax.f32 %v910, %v911
    %v913 = vrot.slane %v912, 2
    %v914 = vmax.f32 %v912, %v913
    %v915 = vrot.slane %v914, 1
    %v916 = vmax.f32 %v914, %v915
    %v917 = vsel %vm902, %v901, -inf
    %v918 = vrot.slane %v917, 4
    %v919 = vmax.f32 %v917, %v918
    %v920 = vrot.slane %v919, 2
    %v921 = vmax.f32 %v919, %v920
    %v922 = vrot.slane %v921, 1
    %v923 = vmax.f32 %v921, %v922
    %vm924 = vcmask 1040384
    %v925 = vsel %vm924, %v909, %v916
    %vm926 = vcmask 1041408
    %v927 = vsel %vm926, %v925, %v923
    %929 = vrot.lane.b32.xlu0 %v927, 48
    %v930 = vpop.permute.xlu0 %929
    %v932 = vsel %vm902, %v882, %v930
    %v933 = vpack.c.bf16 %v932, %v932
    %v934 = vld [vmem:[%s10] sm:$0xf]
    %v935 = vld [vmem:[%s10 + $0x4] sm:$0xf]
    %v936 = vld [vmem:[%s10 + $0x8] sm:$0xf]
    %v937 = vld [vmem:[%s10 + $0xc] sm:$0xf]
    %v938 = vld [vmem:[%s10 + $0x10] sm:$0xf]
    %v939 = vld [vmem:[%s10 + $0x14] sm:$0xf]
    %v940 = vld [vmem:[%s10 + $0x18] sm:$0xf]
    %v941 = vld [vmem:[%s10 + $0x1c] sm:$0xf]
    %v942 = vld [vmem:[%s10 + $0x20] sm:$0xf]
    %v943 = vld [vmem:[%s10 + $0x24] sm:$0xf]
    %v944 = vld [vmem:[%s10 + $0x28] sm:$0xf]
    %v945 = vld [vmem:[%s10 + $0x2c] sm:$0xf]
    %v946 = vld [vmem:[%s11] sm:$0x1]
    %v948 = vlaneseq
    %v949 = vshrl.u32 %v948, 7
    %v950 = vsub.s32 0, %v949
    %v951 = vrot.slane %v946, %v950
    %v965 = vunpack.c.l.b16 %v934
    %v966 = vunpack.c.l.b16 %v935
    %v967 = vunpack.c.l.b16 %v936
    %v968 = vunpack.c.l.b16 %v937
    %v969 = vunpack.c.l.b16 %v938
    %v970 = vunpack.c.l.b16 %v939
    %v971 = vunpack.c.l.b16 %v940
    %v972 = vunpack.c.l.b16 %v941
    %v973 = vunpack.c.l.b16 %v942
    %v974 = vunpack.c.l.b16 %v943
    %v975 = vunpack.c.l.b16 %v944
    %v976 = vunpack.c.l.b16 %v945
    %v977 = vpack.c.b16 %v966, %v965
    %v978 = vpack.c.b16 %v968, %v967
    %v979 = vpack.c.b16 %v970, %v969
    %v980 = vpack.c.b16 %v972, %v971
    %v981 = vpack.c.b16 %v974, %v973
    %v982 = vpack.c.b16 %v976, %v975
    %vm989 = vcmask 785408
    %v991 = vsel %vm989, %v933, 0
    %993 = vmatprep.subr.bf16.mxu0 0
    %994 = vmatpush1.bf16.msra.mxu0 %v977
    %995 = vmatprep.subr.bf16.mxu0 0
    %996 = vmatpush1.bf16.msra.mxu0 %v978
    %997 = vmatprep.subr.bf16.mxu0 0
    %998 = vmatpush1.bf16.msra.mxu0 %v979
    %999 = vmatprep.subr.bf16.mxu0 0
    %1000 = vmatpush1.bf16.msra.mxu0 %v980
    %1001 = vmatprep.subr.bf16.mxu0 0
    %1002 = vmatpush1.bf16.msra.mxu0 %v981
    %1003 = vmatprep.subr.bf16.mxu0 0
    %1004 = vmatpush1.bf16.msra.mxu0 %v982
    %1005 = vmatprep.subr.bf16.mxu0 0
    %1006 = vmatpush1.bf16.msra.mxu0 0
    %1007 = vmatprep.subr.bf16.mxu0 0
    %1008 = vmatpush1.bf16.msra.mxu0 0
    %1009 = vmatprep.subr.bf16.mxu0 0
    %1010 = vmatpush1.bf16.msra.mxu0 0
    %1011 = vmatprep.subr.bf16.mxu0 0
    %1012 = vmatpush1.bf16.msra.mxu0 0
    %1013 = vmatprep.subr.bf16.mxu0 0
    %1014 = vmatpush1.bf16.msra.mxu0 0
    %1015 = vmatprep.subr.bf16.mxu0 0
    %1016 = vmatpush1.bf16.msra.mxu0 0
    %1017 = vmatprep.subr.bf16.mxu0 0
    %1018 = vmatpush1.bf16.msra.mxu0 0
    %1019 = vmatprep.subr.bf16.mxu0 0
    %1020 = vmatpush1.bf16.msra.mxu0 0
    %1021 = vmatprep.subr.bf16.mxu0 0
    %1022 = vmatpush1.bf16.msra.mxu0 0
    %1023 = vmatprep.subr.bf16.mxu0 0
    %1024 = vmatpush1.bf16.msra.mxu0 0
    %1025 = vmatprep.mubr.bf16.mxu0 0
    %1026 = vmatmul.mubr.bf16.gmra.mrb[0].mxu0 %v991
    %v1027 = vpop.f32.mrb[0].mxu0
    %v1028 = vadd.f32 %v951, %v1027
    %v1029 = vpop.f32.mrb[0].mxu0
    %v1030 = vpop.f32.mrb[0].mxu0
    %v1031 = vpop.f32.mrb[0].mxu0
    %1032 = vdwg.mxu0
    %v1033 = vmax.f32 %v1028, 0.0
    %v1034 = vpack.c.bf16 %v1033, %v1033
    %v1035 = vld [vmem:[%s12] sm:$0xf]
    %v1036 = vld [vmem:[%s12 + $0x4] sm:$0xf]
    %v1037 = vld [vmem:[%s12 + $0x8] sm:$0xf]
    %v1038 = vld [vmem:[%s12 + $0xc] sm:$0xf]
    %v1039 = vld [vmem:[%s13] sm:$0x1]
    %v1041 = vlaneseq
    %v1042 = vshrl.u32 %v1041, 7
    %v1043 = vsub.s32 0, %v1042
    %v1044 = vrot.slane %v1039, %v1043
    %v1050 = vunpack.c.l.b16 %v1035
    %v1051 = vunpack.c.l.b16 %v1036
    %v1052 = vunpack.c.l.b16 %v1037
    %v1053 = vunpack.c.l.b16 %v1038
    %v1054 = vpack.c.b16 %v1051, %v1050
    %v1055 = vpack.c.b16 %v1053, %v1052
    %v1059 = vsel %vm69, %v1034, 0
    %1061 = vmatprep.subr.bf16.mxu0 0
    %1062 = vmatpush1.bf16.msra.mxu0 %v1054
    %1063 = vmatprep.subr.bf16.mxu0 0
    %1064 = vmatpush1.bf16.msra.mxu0 %v1055
    %1065 = vmatprep.subr.bf16.mxu0 0
    %1066 = vmatpush1.bf16.msra.mxu0 0
    %1067 = vmatprep.subr.bf16.mxu0 0
    %1068 = vmatpush1.bf16.msra.mxu0 0
    %1069 = vmatprep.subr.bf16.mxu0 0
    %1070 = vmatpush1.bf16.msra.mxu0 0
    %1071 = vmatprep.subr.bf16.mxu0 0
    %1072 = vmatpush1.bf16.msra.mxu0 0
    %1073 = vmatprep.subr.bf16.mxu0 0
    %1074 = vmatpush1.bf16.msra.mxu0 0
    %1075 = vmatprep.subr.bf16.mxu0 0
    %1076 = vmatpush1.bf16.msra.mxu0 0
    %1077 = vmatprep.subr.bf16.mxu0 0
    %1078 = vmatpush1.bf16.msra.mxu0 0
    %1079 = vmatprep.subr.bf16.mxu0 0
    %1080 = vmatpush1.bf16.msra.mxu0 0
    %1081 = vmatprep.subr.bf16.mxu0 0
    %1082 = vmatpush1.bf16.msra.mxu0 0
    %1083 = vmatprep.subr.bf16.mxu0 0
    %1084 = vmatpush1.bf16.msra.mxu0 0
    %1085 = vmatprep.subr.bf16.mxu0 0
    %1086 = vmatpush1.bf16.msra.mxu0 0
    %1087 = vmatprep.subr.bf16.mxu0 0
    %1088 = vmatpush1.bf16.msra.mxu0 0
    %1089 = vmatprep.subr.bf16.mxu0 0
    %1090 = vmatpush1.bf16.msra.mxu0 0
    %1091 = vmatprep.subr.bf16.mxu0 0
    %1092 = vmatpush1.bf16.msra.mxu0 0
    %1093 = vmatprep.mubr.bf16.mxu0 0
    %1094 = vmatmul.mubr.bf16.gmra.mrb[0].mxu0 %v1059
    %v1095 = vpop.f32.mrb[0].mxu0
    %v1096 = vadd.f32 %v1044, %v1095
    %v1097 = vpop.f32.mrb[0].mxu0
    %v1098 = vpop.f32.mrb[0].mxu0
    %v1099 = vpop.f32.mrb[0].mxu0
    %1100 = vdwg.mxu0
    %vm1101 = vcmask 59392
    %v1102 = vsel %vm1101, %v1096, -inf
    %1103 = vmax.xlane.f32.xlu0 %v1102
    %v1104 = vpop.xlane.xlu0 %1103
    %v1105 = vsub.f32 %v1096, %v1104
    %v1106 = vmul.f32 %v1105, 1.442695
    %v1107 = vpow.pop %v1106
    %v1108 = vsel %vm1101, %v1107, 0.0
    %1109 = vadd.xlane.f32.xlu0 %v1108
    %v1110 = vpop.xlane.xlu0 %1109
    %v1111 = vlog2.pop %v1110
    %v1112 = vmul.f32 %v1111, 0.6931472
    %v1113 = vsub.f32 %v1105, %v1112
    %1114 = vst.msk [vmem:[#allocation2] sm:$0x7] %vm1101, %v1113
    // Predicated region
    $region58: #{graph_network_forward.1} parent=1 // pred_check
      _
    $region59: #{graph_network_forward.1} parent=1 // pred_check_branch
      %1116 = sbr.rel (0) target = $region61
    $region60: #{graph_network_forward.1} parent=1 // pred_region
      %s1118 = ssub.s32 64, 64
      %1119 = vsyncadd [#allocation3], %s1118
      %s1121 = sshll.u32 [#allocation2], 4
      %s1122 = int_to_ptr.vmem [resolvable:$true] %s1121
      %1124 = dma.vmem_to_hbm [thread:$0]  %s1122, 64, %s14, [#allocation3]
    $region61: #{graph_network_forward.1} parent=1 // pred_fallthru
      _
    // Predicated region
    $region62: #{graph_network_forward.1} parent=1 // pred_check
      _
    $region63: #{graph_network_forward.1} parent=1 // pred_check_branch
      %1126 = sbr.rel (0) target = $region65
    $region64: #{graph_network_forward.1} parent=1 // pred_region
      %1127 = dma.done [#allocation3], 64
    $region65: #{graph_network_forward.1} parent=1 // pred_fallthru
      _
    %1128 = vsyncpa [#allocation3], 1

</llo_original>
